<compile_context>
chip_gen: v7x
topology: tpu7x:2x2x1
jax: 0.10.0
libtpu: 0.0.40
codegen_flags: <defaults>
</compile_context>

<pallas_src>
import functools
import math

import jax
import jax.numpy as jnp
from jax import lax
from jax.experimental import pallas as pl
from jax.experimental.pallas import tpu as pltpu


_NEG = -1e30                     # finite "-inf" for masking (safe under exp())


def _vmem_budget():
    """~75% of physical VMEM: 48 MiB on v7x (64 MiB), ~96 MiB on v5e/v6e (128 MiB)."""
    try:
        info = pltpu.get_tpu_info()
        cap = getattr(info, "vmem_capacity_bytes", None)
        if cap:
            return int(cap) * 3 // 4
    except Exception:
        pass
    return 48 * 1024 * 1024      # conservative fallback (v7x-safe)


_VMEM_LIMIT = _vmem_budget()
_TM_TARGET = 1024 if _VMEM_LIMIT >= 80 * 1024 * 1024 else 512   # rows per block
_TN_TARGET = 512                                                # output cols per block
_TK_TARGET = 512                                                # contraction per block


def _pick_tile(dim, target, align):
    """Tile for a cdiv-gridded dim: full dim if small, else the aligned target
    (partial tail blocks are handled by Pallas masking)."""
    if dim <= target:
        return dim
    return max(align, (target // align) * align)


def _pick_divisor_tile(dim, target, align):
    """Largest exact divisor of dim that is <= target and a multiple of align,
    falling back to the full dim (needed for contraction / reduction axes)."""
    if dim <= target:
        return dim
    t = (target // align) * align
    while t >= align:
        if dim % t == 0:
            return t
        t -= align
    return dim


# --------------------- fused LayerNorm + Linear (+gelu, +residual) ----------------------

def _fused_linear_kernel(*refs, ln, act, has_bias, has_res, w_trans, single_k):
    it = iter(refs)
    x_ref = next(it)
    if ln:
        g_ref = next(it)
        beta_ref = next(it)
    w_ref = next(it)
    if has_bias:
        b_ref = next(it)
    if has_res:
        r_ref = next(it)
    o_ref = next(it)
    acc_ref = None if single_k else next(it)
    xb_ref = next(it) if ln else None

    j = pl.program_id(1)
    k = pl.program_id(2)

    if ln:
        # LayerNorm in f32, cached in bf16 scratch and reused for every N tile of the
        # same row block (j axis is "arbitrary" so j==0 always runs first per row block).
        @pl.when(j == 0)
        def _():
            x = x_ref[...].astype(jnp.float32)
            mu = jnp.mean(x, axis=-1, keepdims=True)
            xc = x - mu
            var = jnp.mean(xc * xc, axis=-1, keepdims=True)
            xb_ref[...] = (xc * lax.rsqrt(var + 1e-5) * g_ref[...]
                           + beta_ref[...]).astype(jnp.bfloat16)
        xb = xb_ref[...]
    else:
        xb = x_ref[...].astype(jnp.bfloat16)

    w = w_ref[...]                       # bf16 weights straight from HBM
    if w_trans:                          # contract over the last dim of both (A @ B^T)
        y = lax.dot_general(xb, w, (((1,), (1,)), ((), ())),
                            preferred_element_type=jnp.float32)
    else:
        y = jnp.dot(xb, w, preferred_element_type=jnp.float32)

    def epilogue(out):
        if has_bias:
            out = out + b_ref[...]
        if act == "gelu":                # GPT-2 "gelu_new" (tanh approximation)
            c = math.sqrt(2.0 / math.pi)
            out = 0.5 * out * (1.0 + jnp.tanh(c * (out + 0.044715 * out * out * out)))
        if has_res:
            out = out + r_ref[...].astype(jnp.float32)
        o_ref[...] = out.astype(o_ref.dtype)

    if single_k:
        # K-grid == 1: no accumulator round trip, write the epilogue result directly.
        epilogue(y)
    else:
        @pl.when(k == 0)
        def _():
            acc_ref[...] = jnp.zeros_like(acc_ref)
        acc_ref[...] += y

        @pl.when(k == pl.num_programs(2) - 1)
        def _():
            epilogue(acc_ref[...])


def fused_linear(x, w, b=None, *, ln_params=None, activation="none",
                 residual=None, w_transposed=False, out_dtype=jnp.float32):
    n, kdim = x.shape
    if w_transposed:
        m, kw = w.shape
    else:
        kw, m = w.shape
    assert kw == kdim

    ln = ln_params is not None
    tm = _pick_tile(n, _TM_TARGET, 256)
    tn = _pick_tile(m, _TN_TARGET, 128)
    tk = kdim if ln else _pick_divisor_tile(kdim, _TK_TARGET, 128)  # LN needs full rows
    k_grid = kdim // tk
    single_k = (k_grid == 1)

    operands = [x]
    in_specs = [pl.BlockSpec((tm, tk), lambda i, j, k: (i, k))]
    if ln:
        g, beta = ln_params
        operands += [g.reshape(1, kdim), beta.reshape(1, kdim)]
        in_specs += [pl.BlockSpec((1, tk), lambda i, j, k: (0, k)),
                     pl.BlockSpec((1, tk), lambda i, j, k: (0, k))]
    operands.append(w)
    if w_transposed:
        in_specs.append(pl.BlockSpec((tn, tk), lambda i, j, k: (j, k)))
    else:
        in_specs.append(pl.BlockSpec((tk, tn), lambda i, j, k: (k, j)))
    if b is not None:
        operands.append(b.reshape(1, m))
        in_specs.append(pl.BlockSpec((1, tn), lambda i, j, k: (0, j)))
    if residual is not None:
        operands.append(residual)
        in_specs.append(pl.BlockSpec((tm, tn), lambda i, j, k: (i, j)))

    scratch = []
    if not single_k:
        scratch.append(pltpu.VMEM((tm, tn), jnp.float32))
    if ln:
        scratch.append(pltpu.VMEM((tm, kdim), jnp.bfloat16))

    kernel = functools.partial(_fused_linear_kernel, ln=ln, act=activation,
                               has_bias=b is not None, has_res=residual is not None,
                               w_trans=w_transposed, single_k=single_k)
    # With the LN cache the j axis must be iterated in order per row block.
    dims = ("parallel", "arbitrary" if ln else "parallel", "arbitrary")
    return pl.pallas_call(
        kernel,
        out_shape=jax.ShapeDtypeStruct((n, m), out_dtype),
        grid=(pl.cdiv(n, tm), pl.cdiv(m, tn), k_grid),
        in_specs=in_specs,
        out_specs=pl.BlockSpec((tm, tn), lambda i, j, k: (i, j)),
        scratch_shapes=scratch,
        compiler_params=pltpu.CompilerParams(
            dimension_semantics=dims, vmem_limit_bytes=_VMEM_LIMIT),
    )(*operands)


# ----------------------------- flash attention (multi-head blocks) ----------------------

def _flash_attention_kernel(mask_ref, q_ref, k_ref, v_ref, o_ref,
                            m_sc, l_sc, acc_sc, *, scale, tq, tk, n_head):
    qi = pl.program_id(1)
    kv = pl.program_id(2)

    @pl.when(kv == 0)
    def _():
        m_sc[...] = jnp.full_like(m_sc, _NEG)
        l_sc[...] = jnp.zeros_like(l_sc)
        acc_sc[...] = jnp.zeros_like(acc_sc)

    # Causal skip: this kv tile lies entirely above the diagonal for this q tile.
    @pl.when(kv * tk <= qi * tq + (tq - 1))
    def _():
        q = q_ref[...]                   # (H, tq, Dh) bf16
        kk = k_ref[...]                  # (H, tk, Dh)
        v = v_ref[...]
        s = jnp.einsum("hqd,hkd->hqk", q, kk,
                       preferred_element_type=jnp.float32) * scale      # (H, tq, tk)

        q_pos = qi * tq + lax.broadcasted_iota(jnp.int32, (tq, tk), 0)
        k_pos = kv * tk + lax.broadcasted_iota(jnp.int32, (tq, tk), 1)
        keep = jnp.logical_and(q_pos >= k_pos, mask_ref[0] > 0.5)       # (tq, tk)
        # Fully-padded query rows get a uniform softmax over _NEG scores; harmless
        # because those positions are excluded from the loss.
        s = jnp.where(keep[None], s, _NEG)

        m_new = jnp.maximum(m_sc[...], jnp.max(s, axis=-1, keepdims=True))  # (H, tq, 1)
        alpha = jnp.exp(m_sc[...] - m_new)
        p = jnp.exp(s - m_new)
        l_sc[...] = alpha * l_sc[...] + jnp.sum(p, axis=-1, keepdims=True)
        acc_sc[...] = alpha * acc_sc[...] + jnp.einsum(
            "hqk,hkd->hqd", p.astype(v.dtype), v, preferred_element_type=jnp.float32)
        m_sc[...] = m_new

    @pl.when(kv == pl.num_programs(2) - 1)
    def _():
        normed = acc_sc[...] * pl.reciprocal(l_sc[...], approx=True)    # (H, tq, Dh)
        # Merge heads in-kernel -> lane-dense (tq, H*Dh) output block (no XLA transpose).
        merged = jnp.concatenate([normed[h] for h in range(n_head)], axis=-1)
        o_ref[0] = merged.astype(o_ref.dtype)


def attention(q, k, v, mask3, n_head):
    # q, k, v: (B*H, T, Dh) bf16;  mask3: (B, 1, T) float32 (1 = attend, 0 = pad)
    bh, t, dh = q.shape
    b = bh // n_head
    c = n_head * dh
    scale = 1.0 / math.sqrt(dh)
    tq = _pick_divisor_tile(t, 256, 128)
    tk = _pick_divisor_tile(t, 512, 128)

    return pl.pallas_call(
        functools.partial(_flash_attention_kernel, scale=scale, tq=tq, tk=tk,
                          n_head=n_head),
        out_shape=jax.ShapeDtypeStruct((b, t, c), q.dtype),             # (B, T, C)
        grid=(b, t // tq, t // tk),
        in_specs=[pl.BlockSpec((1, 1, tk), lambda i, j, kk: (i, 0, kk)),
                  pl.BlockSpec((n_head, tq, dh), lambda i, j, kk: (i, j, 0)),
                  pl.BlockSpec((n_head, tk, dh), lambda i, j, kk: (i, kk, 0)),
                  pl.BlockSpec((n_head, tk, dh), lambda i, j, kk: (i, kk, 0))],
        out_specs=pl.BlockSpec((1, tq, c), lambda i, j, kk: (i, j, 0)),
        scratch_shapes=[pltpu.VMEM((n_head, tq, 1), jnp.float32),
                        pltpu.VMEM((n_head, tq, 1), jnp.float32),
                        pltpu.VMEM((n_head, tq, dh), jnp.float32)],
        compiler_params=pltpu.CompilerParams(
            dimension_semantics=("parallel", "parallel", "arbitrary"),
            vmem_limit_bytes=_VMEM_LIMIT),
    )(mask3, q, k, v)


# ----------------------------- row-tiled cross entropy ----------------------------------

def _xent_kernel(logits_ref, labels_ref, nll_ref, cnt_ref, *, n_rows, tr):
    i = pl.program_id(0)
    logits = logits_ref[...].astype(jnp.float32)       # (tr, V)
    labels = labels_ref[...]                           # (tr, 1) int32
    nb, v = logits.shape

    row = i * tr + lax.broadcasted_iota(jnp.int32, (nb, 1), 0)
    valid = jnp.logical_and(labels != -100, row < n_rows)   # mask tail + ignore_index

    m = jnp.max(logits, axis=-1, keepdims=True)
    lse = jnp.log(jnp.sum(jnp.exp(logits - m), axis=-1, keepdims=True)) + m
    onehot = lax.broadcasted_iota(jnp.int32, (nb, v), 1) == labels
    picked = jnp.sum(jnp.where(onehot, logits, 0.0), axis=-1, keepdims=True)

    nll = jnp.where(valid, lse - picked, 0.0)           # where() also kills tail NaNs
    nll_ref[...] = jnp.sum(nll, keepdims=True)
    cnt_ref[...] = jnp.sum(valid.astype(jnp.float32), keepdims=True)


def cross_entropy(logits2d, labels1d):
    # TODO(synk): for maximum savings, fuse this LSE into the lm_head epilogue so the
    #             logits never round-trip to HBM at all.
    n, v = logits2d.shape
    per_row = 12 * v                                   # bf16 dbuf input + f32 temps
    tr = max(8, min(512, (_VMEM_LIMIT // per_row) // 8 * 8))
    if n <= tr:
        tr = n
    n_tiles = pl.cdiv(n, tr)

    nll, cnt = pl.pallas_call(
        functools.partial(_xent_kernel, n_rows=n, tr=tr),
        out_shape=(jax.ShapeDtypeStruct((n_tiles, 1), jnp.float32),
                   jax.ShapeDtypeStruct((n_tiles, 1), jnp.float32)),
        grid=(n_tiles,),
        in_specs=[pl.BlockSpec((tr, v), lambda i: (i, 0)),
                  pl.BlockSpec((tr, 1), lambda i: (i, 0))],
        out_specs=(pl.BlockSpec((1, 1), lambda i: (i, 0)),
                   pl.BlockSpec((1, 1), lambda i: (i, 0))),
        compiler_params=pltpu.CompilerParams(
            dimension_semantics=("parallel",),
            vmem_limit_bytes=_VMEM_LIMIT),
    )(logits2d, labels1d.reshape(n, 1).astype(jnp.int32))
    # Tiny scalar reduction stays in plain JAX (lets both TCs stream logits tiles).
    return jnp.sum(nll) / jnp.maximum(jnp.sum(cnt), 1.0)


# ----------------------------- model glue ------------------------------------------------

def init_params(key, vocab, n_ctx, n_embd, n_layer):
    def nrm(k, shape, std=0.02, dtype=jnp.bfloat16):
        return (std * jax.random.normal(k, shape)).astype(dtype)

    keys = jax.random.split(key, 2 + 4 * n_layer)
    p = {
        "wte": nrm(keys[0], (vocab, n_embd)),                  # bf16, tied with lm_head
        "wpe": nrm(keys[1], (n_ctx, n_embd), std=0.01, dtype=jnp.float32),
        "lnf_g": jnp.ones((n_embd,), jnp.float32),
        "lnf_b": jnp.zeros((n_embd,), jnp.float32),
        "blocks": [],
    }
    for l in range(n_layer):
        kk = keys[2 + 4 * l: 2 + 4 * (l + 1)]
        p["blocks"].append({
            "ln1_g": jnp.ones((n_embd,), jnp.float32),
            "ln1_b": jnp.zeros((n_embd,), jnp.float32),
            "attn_w": nrm(kk[0], (n_embd, 3 * n_embd)),
            "attn_b": jnp.zeros((3 * n_embd,), jnp.float32),
            "proj_w": nrm(kk[1], (n_embd, n_embd)),
            "proj_b": jnp.zeros((n_embd,), jnp.float32),
            "ln2_g": jnp.ones((n_embd,), jnp.float32),
            "ln2_b": jnp.zeros((n_embd,), jnp.float32),
            "fc_w": nrm(kk[2], (n_embd, 4 * n_embd)),
            "fc_b": jnp.zeros((4 * n_embd,), jnp.float32),
            "out_w": nrm(kk[3], (4 * n_embd, n_embd)),
            "out_b": jnp.zeros((n_embd,), jnp.float32),
        })
    return p


def gpt2_forward(params, input_ids, attention_mask, labels, n_head):
    B, T = input_ids.shape
    V, C = params["wte"].shape
    Dh = C // n_head

    # Embedding gather (plain-JAX glue); residual stream kept as an f32 (B*T, C) slab.
    h = (params["wte"][input_ids].astype(jnp.float32)
         + params["wpe"][jnp.arange(T)][None]).reshape(B * T, C)
    mask3 = attention_mask.astype(jnp.float32).reshape(B, 1, T)

    for blk in params["blocks"]:
        # LN1 fused into the QKV projection; qkv stored bf16 (halves HBM traffic).
        qkv = fused_linear(h, blk["attn_w"], blk["attn_b"],
                           ln_params=(blk["ln1_g"], blk["ln1_b"]),
                           out_dtype=jnp.bfloat16)                        # (B*T, 3C)

        # TODO(synk): the head-split stays XLA transpose glue; emitting q/k/v as three
        # separate lane-dense outputs of the QKV kernel would remove this copy too.
        qkv = qkv.reshape(B, T, 3, n_head, Dh).transpose(2, 0, 3, 1, 4)   # (3,B,H,T,Dh)
        q = qkv[0].reshape(B * n_head, T, Dh)
        k = qkv[1].reshape(B * n_head, T, Dh)
        v = qkv[2].reshape(B * n_head, T, Dh)

        # Attention writes (B, T, C) directly (heads merged in-kernel) -> no merge
        # transpose and lane-dense stores.
        ao = attention(q, k, v, mask3, n_head).reshape(B * T, C)

        # Attention out-projection with the residual add fused into the epilogue.
        h = fused_linear(ao, blk["proj_w"], blk["proj_b"], residual=h,
                         out_dtype=jnp.float32)

        # LN2 + FC + gelu fused; MLP out-projection with residual fused.
        mlp = fused_linear(h, blk["fc_w"], blk["fc_b"],
                           ln_params=(blk["ln2_g"], blk["ln2_b"]),
                           activation="gelu", out_dtype=jnp.bfloat16)
        h = fused_linear(mlp, blk["out_w"], blk["out_b"], residual=h,
                         out_dtype=jnp.float32)

    # lm_head: final LN fused; tied embedding used directly in (V, C) layout; logits in
    # bf16 to halve the HBM write and the cross-entropy re-read. The N-grid uses cdiv,
    # so an unaligned real vocab (50257) just gets a masked tail tile.
    logits = fused_linear(h, params["wte"], None,
                          ln_params=(params["lnf_g"], params["lnf_b"]),
                          w_transposed=True, out_dtype=jnp.bfloat16)       # (B*T, V)

    loss = None
    if labels is not None:
        # Shift handled on the tiny labels tensor instead of slicing the logits.
        shifted = jnp.concatenate(
            [labels[:, 1:], jnp.full((B, 1), -100, labels.dtype)], axis=1)
        loss = cross_entropy(logits, shifted.reshape(B * T))
    return loss, logits.reshape(B, T, V)


# ----------------------------- demo / main -----------------------------------------------

if __name__ == "__main__":
    # Small-but-representative sizes: 4C=1024 exercises the K-tiled accumulator path,
    # 3C=768 exercises the masked N-tail path (tn=512).
    VOCAB, N_CTX, N_EMBD, N_HEAD, N_LAYER = 128, 16, 256, 4, 2
    B, T = 2, 8

    root = jax.random.PRNGKey(0)
    k_params, k_ids = jax.random.split(root)
    params = init_params(k_params, VOCAB, N_CTX, N_EMBD, N_LAYER)

    input_ids = jax.random.randint(k_ids, (B, T), 0, VOCAB, dtype=jnp.int32)
    attention_mask = jnp.array([[1] * T, [1] * (T - 2) + [0] * 2], dtype=jnp.int32)
    # Labels = input ids, with padded positions ignored (HF convention: -100).
    labels = jnp.where(attention_mask == 1, input_ids, -100).astype(jnp.int32)

    loss, logits = gpt2_forward(params, input_ids, attention_mask, labels, N_HEAD)
    loss = jax.block_until_ready(loss)
    logits = jax.block_until_ready(logits)

    assert logits.shape == (B, T, VOCAB)
    assert bool(jnp.isfinite(loss)) and bool(jnp.all(jnp.isfinite(logits)))
    print("KERNEL_OK")
</pallas_src>

<mosaic_0001>
module attributes {stable_mosaic.version = 11 : i64} {
  func.func @_fused_linear_kernel(%arg0: i32, %arg1: i32, %arg2: i32, %arg3: memref<16x256xf32, #tpu.memory_space<vmem>>, %arg4: memref<1x256xf32, #tpu.memory_space<vmem>>, %arg5: memref<1x256xf32, #tpu.memory_space<vmem>>, %arg6: memref<256x512xbf16, #tpu.memory_space<vmem>>, %arg7: memref<1x512xf32, #tpu.memory_space<vmem>>, %arg8: memref<16x512xbf16, #tpu.memory_space<vmem>>, %arg9: memref<16x256xbf16, #tpu.memory_space<vmem>>) attributes {dimension_semantics = [#tpu.dimension_semantics<parallel>, #tpu.dimension_semantics<arbitrary>, #tpu.dimension_semantics<arbitrary>], iteration_bounds = array<i64: 1, 2, 1>, scalar_prefetch = 0 : i64, scratch_operands = 1 : i64, tpu.core_type = #tpu.core_type<tc>, window_params = [{transform_indices = @transform_0, window_bounds = array<i64: 16, 256>}, {transform_indices = @transform_1, window_bounds = array<i64: 1, 256>}, {transform_indices = @transform_2, window_bounds = array<i64: 1, 256>}, {transform_indices = @transform_3, window_bounds = array<i64: 256, 512>}, {transform_indices = @transform_4, window_bounds = array<i64: 1, 512>}, {transform_indices = @transform_5, window_bounds = array<i64: 16, 512>}]} {
    %c0_i32 = arith.constant 0 : i32
    %0 = arith.cmpi eq, %arg1, %c0_i32 : i32
    %1 = arith.extui %0 : i1 to i32
    %c0_i32_0 = arith.constant 0 : i32
    %2 = arith.cmpi ne, %1, %c0_i32_0 : i32
    scf.if %2 {
      %c0_8 = arith.constant 0 : index
      %c0_9 = arith.constant 0 : index
      %11 = vector.load %arg3[%c0_8, %c0_9] : memref<16x256xf32, #tpu.memory_space<vmem>>, vector<16x256xf32>
      %cst_10 = arith.constant dense<0.000000e+00> : vector<16xf32>
      %12 = vector.multi_reduction <add>, %11, %cst_10 [1] : vector<16x256xf32> to vector<16xf32>
      %13 = vector.shape_cast %12 : vector<16xf32> to vector<16x1xf32>
      %cst_11 = arith.constant 2.560000e+02 : f32
      %14 = vector.broadcast %cst_11 : f32 to vector<16x1xf32>
      %15 = arith.divf %13, %14 : vector<16x1xf32>
      %16 = vector.broadcast %15 : vector<16x1xf32> to vector<16x256xf32>
      %17 = arith.subf %11, %16 : vector<16x256xf32>
      %18 = arith.mulf %17, %17 : vector<16x256xf32>
      %cst_12 = arith.constant dense<0.000000e+00> : vector<16xf32>
      %19 = vector.multi_reduction <add>, %18, %cst_12 [1] : vector<16x256xf32> to vector<16xf32>
      %20 = vector.shape_cast %19 : vector<16xf32> to vector<16x1xf32>
      %cst_13 = arith.constant 2.560000e+02 : f32
      %21 = vector.broadcast %cst_13 : f32 to vector<16x1xf32>
      %22 = arith.divf %20, %21 : vector<16x1xf32>
      %cst_14 = arith.constant 9.99999974E-6 : f32
      %23 = vector.broadcast %cst_14 : f32 to vector<16x1xf32>
      %24 = arith.addf %22, %23 : vector<16x1xf32>
      %25 = math.rsqrt %24 : vector<16x1xf32>
      %26 = vector.broadcast %25 : vector<16x1xf32> to vector<16x256xf32>
      %27 = arith.mulf %17, %26 : vector<16x256xf32>
      %c0_15 = arith.constant 0 : index
      %c0_16 = arith.constant 0 : index
      %28 = vector.load %arg4[%c0_15, %c0_16] : memref<1x256xf32, #tpu.memory_space<vmem>>, vector<1x256xf32>
      %29 = vector.broadcast %28 : vector<1x256xf32> to vector<16x256xf32>
      %30 = arith.mulf %27, %29 : vector<16x256xf32>
      %c0_17 = arith.constant 0 : index
      %c0_18 = arith.constant 0 : index
      %31 = vector.load %arg5[%c0_17, %c0_18] : memref<1x256xf32, #tpu.memory_space<vmem>>, vector<1x256xf32>
      %32 = vector.broadcast %31 : vector<1x256xf32> to vector<16x256xf32>
      %33 = arith.addf %30, %32 : vector<16x256xf32>
      %34 = arith.truncf %33 : vector<16x256xf32> to vector<16x256xbf16>
      %c0_19 = arith.constant 0 : index
      %c0_20 = arith.constant 0 : index
      %35 = vector.load %arg9[%c0_19, %c0_20] : memref<16x256xbf16, #tpu.memory_space<vmem>>, vector<16x256xbf16>
      tpu.vector_store %arg9[%c0_19, %c0_20], %34 {strides = array<i32>} : memref<16x256xbf16, #tpu.memory_space<vmem>>, vector<16x256xbf16>,
    } else {
    }
    %c0 = arith.constant 0 : index
    %c0_1 = arith.constant 0 : index
    %3 = vector.load %arg9[%c0, %c0_1] : memref<16x256xbf16, #tpu.memory_space<vmem>>, vector<16x256xbf16>
    %c0_2 = arith.constant 0 : index
    %c0_3 = arith.constant 0 : index
    %4 = vector.load %arg6[%c0_2, %c0_3] : memref<256x512xbf16, #tpu.memory_space<vmem>>, vector<256x512xbf16>
    %cst = arith.constant dense<0.000000e+00> : vector<16x512xf32>
    %5 = tpu.matmul %3, %4, %cst {dimension_numbers = #tpu.dot_dimension_numbers<[1], [0], [0], [1], [0, 0, 1, 1], [], []>} : vector<16x256xbf16>, vector<256x512xbf16>, vector<16x512xf32> -> vector<16x512xf32>
    %c0_4 = arith.constant 0 : index
    %c0_5 = arith.constant 0 : index
    %6 = vector.load %arg7[%c0_4, %c0_5] : memref<1x512xf32, #tpu.memory_space<vmem>>, vector<1x512xf32>
    %7 = vector.broadcast %6 : vector<1x512xf32> to vector<16x512xf32>
    %8 = arith.addf %5, %7 : vector<16x512xf32>
    %9 = arith.truncf %8 : vector<16x512xf32> to vector<16x512xbf16>
    %c0_6 = arith.constant 0 : index
    %c0_7 = arith.constant 0 : index
    %10 = vector.load %arg8[%c0_6, %c0_7] : memref<16x512xbf16, #tpu.memory_space<vmem>>, vector<16x512xbf16>
    tpu.vector_store %arg8[%c0_6, %c0_7], %9 {strides = array<i32>} : memref<16x512xbf16, #tpu.memory_space<vmem>>, vector<16x512xbf16>,
    return
  }
  func.func @transform_0(%arg0: i32, %arg1: i32, %arg2: i32) -> (i32, i32) {
    %c0_i32 = arith.constant 0 : i32
    return %arg0, %arg2 : i32, i32
  }
  func.func @transform_1(%arg0: i32, %arg1: i32, %arg2: i32) -> (i32, i32) {
    %c0_i32 = arith.constant 0 : i32
    %c0_i32_0 = arith.constant 0 : i32
    return %c0_i32, %arg2 : i32, i32
  }
  func.func @transform_2(%arg0: i32, %arg1: i32, %arg2: i32) -> (i32, i32) {
    %c0_i32 = arith.constant 0 : i32
    %c0_i32_0 = arith.constant 0 : i32
    return %c0_i32, %arg2 : i32, i32
  }
  func.func @transform_3(%arg0: i32, %arg1: i32, %arg2: i32) -> (i32, i32) {
    %c0_i32 = arith.constant 0 : i32
    return %arg2, %arg1 : i32, i32
  }
  func.func @transform_4(%arg0: i32, %arg1: i32, %arg2: i32) -> (i32, i32) {
    %c0_i32 = arith.constant 0 : i32
    %c0_i32_0 = arith.constant 0 : i32
    return %c0_i32, %arg1 : i32, i32
  }
  func.func @transform_5(%arg0: i32, %arg1: i32, %arg2: i32) -> (i32, i32) {
    %c0_i32 = arith.constant 0 : i32
    return %arg0, %arg1 : i32, i32
  }
}

</mosaic_0001>

<llo_original>
// kernel: tpu_custom_call.1
$region0: #{tpu_custom_call.1}
  #allocation0 [shape = 'u32[]', space=smem, size = 0x4, offset = 0x4, fixed_abs, tag = 'smem constant byte address 0x4 - core index']
  #allocation1 [shape = 'u32[144,128]{1,0:T(1,128)}', space=vmem, size = 0x12000, scoped, tag = 'internal scratch']
  #allocation2 [shape = 'bf16[16,256]{1,0:T(16,128)(2,1)}', space=vmem, size = 0x2000, scoped, tag = 'scratch operand']
  %s0 = inlined_call_operand.hbm [shape: f32[16,256], index: 0, kind: input, shape index: {}]
  %s1 = inlined_call_operand.vmem [shape: f32[1,256], index: 1, kind: input, shape index: {}]
  %s2 = inlined_call_operand.vmem [shape: f32[1,256], index: 2, kind: input, shape index: {}]
  %s3 = inlined_call_operand.hbm [shape: bf16[256,768], index: 3, kind: input, shape index: {}]
  %s4 = inlined_call_operand.vmem [shape: f32[1,768], index: 4, kind: input, shape index: {}]
  %s5 = inlined_call_operand.hbm [shape: bf16[16,768], index: 5, kind: output, shape index: {}]
  %s6 = sld [smem:[#allocation0]]
  $region65: #{tpu_custom_call.1} parent=0
    _
  %s8 = ssub.s32 1, %s6
  %s9 = scalar_select 0, %s8, %s6
  $region1: #{tpu_custom_call.1} parent=0
    #allocation3 [shape = 'u8[16384]{0}', space=vmem, size = 0x4000, scoped, tag = 'input window, operand 0, single buffered']
    #allocation4 [shape = 's32[2]{0}', space=sflag, size = 0x8, scoped, tag = 'scoped memory for tpu_custom_call.1']
    #allocation5 [shape = 's32[2]{0}', space=sflag, size = 0x8, scoped, tag = 'scoped memory for tpu_custom_call.1']
    #allocation6 [shape = 'u8[524288]{0}', space=vmem, size = 0x80000, scoped, tag = 'input window, operand 3']
    #allocation7 [shape = 's32[2]{0}', space=sflag, size = 0x8, scoped, tag = 'scoped memory for tpu_custom_call.1']
    #allocation8 [shape = 'u8[32768]{0}', space=vmem, size = 0x8000, scoped, tag = 'output window, operand 0']
    %10 = vsyncpa [#allocation4], 0
    %11 = vsyncpa [#allocation7], 0
    %s12 = scalar_lea.sflag [#allocation7], 1
    %13 = vsyncpa %s12, 0
    %14 = vsyncpa [#allocation5], 0
    %s15 = scalar_lea.sflag [#allocation5], 1
    %16 = vsyncpa %s15, 0
    loop: start=0, step=1, limit=4
    $region2: #{tpu_custom_call.1} parent=1 // loop_pre_header
      _
    $region3: #{tpu_custom_call.1} parent=1 // loop_header
      %s18 = sphi 0, %s22
      %p19 = scmp.ge.s32.totalorder %s18, 4
      %s25 = sphi 0, %s44
      %s26 = sphi 0, %s40
      %s27 = sphi 0, %s36
      %s28 = sphi 0, %s25
      %s29 = sphi 0, %s26
      %s30 = sphi 0, %s27
      %s31 = sphi 0, %s28
      %s32 = sphi 0, %s29
      %s33 = sphi 0, %s30
      %s49 = sphi 0, %s51
      %s52 = sphi 0, %s49
      %s53 = sphi 0, %s52
      %s69 = sphi 0, %s53
      %s75 = sphi 0, %s77
      %s78 = sphi 0, %s75
      %s79 = sphi 0, %s78
      %s95 = sphi 0, %s79
      %s101 = sphi 0, %s103
      %s104 = sphi 0, %s101
      %s105 = sphi 0, %s104
      %s121 = sphi 0, %s105
      %s129 = sphi 0, %s131
      %s132 = sphi 0, %s129
      %s133 = sphi 0, %s132
      %s149 = sphi 0, %s133
      %s155 = sphi 0, %s157
      %s158 = sphi 0, %s155
      %s159 = sphi 0, %s158
      %s175 = sphi 0, %s159
      %s183 = sphi 0, %s185
      %s186 = sphi 0, %s183
      %s187 = sphi 0, %s186
      %s203 = sphi 0, %s187
    $region4: #{tpu_custom_call.1} parent=1 // loop_header_branch
      %21 = sbr.rel (%p19) target = $region8
    $region5: #{tpu_custom_call.1} parent=1 // loop_body
      %s23 = ssub.s32 %s18, 1
      %s24 = ssub.s32 %s18, 2
      %s34 = sadd.s32 1, %s27
      %p35 = scmp.ge.s32.totalorder %s34, 1
      %s36 = scalar_select %p35, 0, %s34
      %s37 = sadd.s32 1, %s26
      %s38 = scalar_select %p35, %s37, %s26
      %p39 = scmp.ge.s32.totalorder %s38, 2
      %s40 = scalar_select %p39, 0, %s38
      %s41 = sadd.s32 1, %s25
      %s42 = scalar_select %p39, %s41, %s25
      %p43 = scmp.ge.s32.totalorder %s42, 1
      %s44 = scalar_select %p43, 0, %s42
      %s45 = ssub.s32 %s25, %s44
      %s46 = ssub.s32 %s27, %s36
      %s47 = sor.u32 %s45, %s46
      %p48 = scmp.eq.s32.totalorder %s47, 0
      %s50 = sadd.s32 %s49, 1
      %s51 = scalar_select %p48, %s49, %s50
      %p54 = pneg %p48
      %p55 = scmp.eq.s32.totalorder %s18, 1
      %p56 = por %p54, %p55
      %p57 = scmp.ne.s32.totalorder %s49, %s52
      %p58 = scmp.eq.s32.totalorder %s18, 0
      %p59 = por %p57, %p58
      %p60 = scmp.ne.s32.totalorder %s49, %s52
      %p61 = scmp.eq.s32.totalorder %s23, 1
      %p62 = por %p60, %p61
      %p63 = scmp.ne.s32.totalorder %s52, %s53
      %p64 = scmp.eq.s32.totalorder %s23, 0
      %p65 = por %p63, %p64
      %p66 = scmp.ne.s32.totalorder %s52, %s53
      %p67 = scmp.eq.s32.totalorder %s24, 1
      %p68 = por %p66, %p67
      %p70 = scmp.ne.s32.totalorder %s53, %s69
      %p71 = scmp.eq.s32.totalorder %s24, 0
      %p72 = por %p70, %p71
      %s73 = ssub.s32 %s27, %s36
      %p74 = scmp.eq.s32.totalorder %s73, 0
      %s76 = sadd.s32 %s75, 1
      %s77 = scalar_select %p74, %s75, %s76
      %p80 = pneg %p74
      %p81 = scmp.eq.s32.totalorder %s18, 1
      %p82 = por %p80, %p81
      %p83 = scmp.ne.s32.totalorder %s75, %s78
      %p84 = scmp.eq.s32.totalorder %s18, 0
      %p85 = por %p83, %p84
      %p86 = scmp.ne.s32.totalorder %s75, %s78
      %p87 = scmp.eq.s32.totalorder %s23, 1
      %p88 = por %p86, %p87
      %p89 = scmp.ne.s32.totalorder %s78, %s79
      %p90 = scmp.eq.s32.totalorder %s23, 0
      %p91 = por %p89, %p90
      %p92 = scmp.ne.s32.totalorder %s78, %s79
      %p93 = scmp.eq.s32.totalorder %s24, 1
      %p94 = por %p92, %p93
      %p96 = scmp.ne.s32.totalorder %s79, %s95
      %p97 = scmp.eq.s32.totalorder %s24, 0
      %p98 = por %p96, %p97
      %s99 = ssub.s32 %s27, %s36
      %p100 = scmp.eq.s32.totalorder %s99, 0
      %s102 = sadd.s32 %s101, 1
      %s103 = scalar_select %p100, %s101, %s102
      %p106 = pneg %p100
      %p107 = scmp.eq.s32.totalorder %s18, 1
      %p108 = por %p106, %p107
      %p109 = scmp.ne.s32.totalorder %s101, %s104
      %p110 = scmp.eq.s32.totalorder %s18, 0
      %p111 = por %p109, %p110
      %p112 = scmp.ne.s32.totalorder %s101, %s104
      %p113 = scmp.eq.s32.totalorder %s23, 1
      %p114 = por %p112, %p113
      %p115 = scmp.ne.s32.totalorder %s104, %s105
      %p116 = scmp.eq.s32.totalorder %s23, 0
      %p117 = por %p115, %p116
      %p118 = scmp.ne.s32.totalorder %s104, %s105
      %p119 = scmp.eq.s32.totalorder %s24, 1
      %p120 = por %p118, %p119
      %p122 = scmp.ne.s32.totalorder %s105, %s121
      %p123 = scmp.eq.s32.totalorder %s24, 0
      %p124 = por %p122, %p123
      %s125 = ssub.s32 %s27, %s36
      %s126 = ssub.s32 %s26, %s40
      %s127 = sor.u32 %s125, %s126
      %p128 = scmp.eq.s32.totalorder %s127, 0
      %s130 = sadd.s32 %s129, 1
      %s131 = scalar_select %p128, %s129, %s130
      %p134 = pneg %p128
      %p135 = scmp.eq.s32.totalorder %s18, 1
      %p136 = por %p134, %p135
      %p137 = scmp.ne.s32.totalorder %s129, %s132
      %p138 = scmp.eq.s32.totalorder %s18, 0
      %p139 = por %p137, %p138
      %p140 = scmp.ne.s32.totalorder %s129, %s132
      %p141 = scmp.eq.s32.totalorder %s23, 1
      %p142 = por %p140, %p141
      %p143 = scmp.ne.s32.totalorder %s132, %s133
      %p144 = scmp.eq.s32.totalorder %s23, 0
      %p145 = por %p143, %p144
      %p146 = scmp.ne.s32.totalorder %s132, %s133
      %p147 = scmp.eq.s32.totalorder %s24, 1
      %p148 = por %p146, %p147
      %p150 = scmp.ne.s32.totalorder %s133, %s149
      %p151 = scmp.eq.s32.totalorder %s24, 0
      %p152 = por %p150, %p151
      %s153 = ssub.s32 %s26, %s40
      %p154 = scmp.eq.s32.totalorder %s153, 0
      %s156 = sadd.s32 %s155, 1
      %s157 = scalar_select %p154, %s155, %s156
      %p160 = pneg %p154
      %p161 = scmp.eq.s32.totalorder %s18, 1
      %p162 = por %p160, %p161
      %p163 = scmp.ne.s32.totalorder %s155, %s158
      %p164 = scmp.eq.s32.totalorder %s18, 0
      %p165 = por %p163, %p164
      %p166 = scmp.ne.s32.totalorder %s155, %s158
      %p167 = scmp.eq.s32.totalorder %s23, 1
      %p168 = por %p166, %p167
      %p169 = scmp.ne.s32.totalorder %s158, %s159
      %p170 = scmp.eq.s32.totalorder %s23, 0
      %p171 = por %p169, %p170
      %p172 = scmp.ne.s32.totalorder %s158, %s159
      %p173 = scmp.eq.s32.totalorder %s24, 1
      %p174 = por %p172, %p173
      %p176 = scmp.ne.s32.totalorder %s159, %s175
      %p177 = scmp.eq.s32.totalorder %s24, 0
      %p178 = por %p176, %p177
      %s179 = ssub.s32 %s25, %s44
      %s180 = ssub.s32 %s26, %s40
      %s181 = sor.u32 %s179, %s180
      %p182 = scmp.eq.s32.totalorder %s181, 0
      %s184 = sadd.s32 %s183, 1
      %s185 = scalar_select %p182, %s183, %s184
      %p188 = pneg %p182
      %p189 = scmp.eq.s32.totalorder %s18, 1
      %p190 = por %p188, %p189
      %p191 = scmp.ne.s32.totalorder %s183, %s186
      %p192 = scmp.eq.s32.totalorder %s18, 0
      %p193 = por %p191, %p192
      %p194 = scmp.ne.s32.totalorder %s183, %s186
      %p195 = scmp.eq.s32.totalorder %s23, 1
      %p196 = por %p194, %p195
      %p197 = scmp.ne.s32.totalorder %s186, %s187
      %p198 = scmp.eq.s32.totalorder %s23, 0
      %p199 = por %p197, %p198
      %p200 = scmp.ne.s32.totalorder %s186, %s187
      %p201 = scmp.eq.s32.totalorder %s24, 1
      %p202 = por %p200, %p201
      %p204 = scmp.ne.s32.totalorder %s187, %s203
      %p205 = scmp.eq.s32.totalorder %s24, 0
      %p206 = por %p204, %p205
      %p207 = scmp.le.s32.totalorder 1, %s18
      %p208 = scmp.lt.s32.totalorder %s18, 3
      %p209 = pnand %p207, %p208
      %p210 = pneg %p209
      // Predicated region
      $region9: #{tpu_custom_call.1} parent=5 // pred_check
        _
      $region10: #{tpu_custom_call.1} parent=5 // pred_check_branch
        %212 = sbr.rel (%p209) target = $region12
      $region11: #{tpu_custom_call.1} parent=5 // pred_region
        %s213 = ssub.s32 %s18, 1
        // Predicated region
        $region13: #{tpu_custom_call.1} parent=11 // pred_check
          %p214 = pneg %p65
        $region14: #{tpu_custom_call.1} parent=11 // pred_check_branch
          %216 = sbr.rel (%p214) target = $region16
        $region15: #{tpu_custom_call.1} parent=11 // pred_region
          %s217 = smul.u32 2, %s28
          %s218 = smul.u32 2, %s30
          %s220 = ssub.s32 512, 512
          %221 = vsyncadd [#allocation4], %s220
          %s222 = smul.addr %s217, 2
          %s223 = sadd.s32 %s218, %s222
          %s224 = smul.addr %s223, 128
          %s225 = scalar_lea.hbm %s0, %s224
          %s226 = sshll.u32 [#allocation3], 4
          %s227 = int_to_ptr.vmem [resolvable:$true] %s226
          %232 = dma.hbm_to_vmem [thread:$0]  %s225, 512, %s227, [#allocation4], 256, 256, 16
        $region16: #{tpu_custom_call.1} parent=11 // pred_fallthru
          _
        // Predicated region
        $region17: #{tpu_custom_call.1} parent=11 // pred_check
          %p233 = pneg %p91
        $region18: #{tpu_custom_call.1} parent=11 // pred_check_branch
          %235 = sbr.rel (%p233) target = $region20
        $region19: #{tpu_custom_call.1} parent=11 // pred_region
          %s236 = smul.u32 2, %s30
          %p237 = scmp.lt.s32.totalorder %s236, 1
          %s238 = scalar_select %p237, %s236, 1
          %s239 = scalar_lea.vmem %s1, %s238
          %s240 = smul.u32 2, %s30
        $region20: #{tpu_custom_call.1} parent=11 // pred_fallthru
          _
        // Predicated region
        $region21: #{tpu_custom_call.1} parent=11 // pred_check
          %p241 = pneg %p117
        $region22: #{tpu_custom_call.1} parent=11 // pred_check_branch
          %243 = sbr.rel (%p241) target = $region24
        $region23: #{tpu_custom_call.1} parent=11 // pred_region
          %s244 = smul.u32 2, %s30
          %p245 = scmp.lt.s32.totalorder %s244, 1
          %s246 = scalar_select %p245, %s244, 1
          %s247 = scalar_lea.vmem %s2, %s246
          %s248 = smul.u32 2, %s30
        $region24: #{tpu_custom_call.1} parent=11 // pred_fallthru
          _
      $region12: #{tpu_custom_call.1} parent=5 // pred_fallthru
        _
      %p249 = scmp.lt.s32.totalorder %s18, 2
      // Predicated region
      $region25: #{tpu_custom_call.1} parent=5 // pred_check
        %p250 = pneg %p249
      $region26: #{tpu_custom_call.1} parent=5 // pred_check_branch
        %252 = sbr.rel (%p250) target = $region28
      $region27: #{tpu_custom_call.1} parent=5 // pred_region
        // Predicated region
        $region29: #{tpu_custom_call.1} parent=27 // pred_check
          %p253 = pneg %p139
        $region30: #{tpu_custom_call.1} parent=27 // pred_check_branch
          %255 = sbr.rel (%p253) target = $region32
        $region31: #{tpu_custom_call.1} parent=27 // pred_region
          %s256 = sand.u32 %s129, 1
          %s257 = scalar_lea.sflag [#allocation7], %s256
          %s258 = sand.u32 %s129, 1
          %s259 = smul.addr %s258, 512
          %s260 = scalar_lea.vmem [#allocation6], %s259
          %s261 = smul.u32 32, %s27
          %s262 = smul.u32 4, %s26
          %s263 = ssub.s32 6, %s262
          %p264 = scmp.lt.s32.totalorder %s263, 4
          %s265 = scalar_select %p264, %s263, 4
          %s266 = smul.u32 2048, %s265
          %s268 = ssub.s32 8192, %s266
          %269 = vsyncadd %s257, %s268
          %p270 = scmp.ne.s32.totalorder 0, %s266
          %s271 = smul.addr %s261, 6
          %s272 = sadd.s32 %s262, %s271
          %s273 = smul.addr %s272, 64
          %s274 = scalar_lea.hbm %s3, %s273
          %s275 = smul.u32 %s265, 4
          %s276 = smul.u32 %s275, 32
          %s277 = sshll.u32 %s260, 4
          %s278 = int_to_ptr.vmem [resolvable:$true] %s277
          %s279 = sshll.u32 %s276, 4
          %283 = dma.hbm_to_vmem [thread:$0]  (%p270), %s274, %s279, %s278, %s257, 384, 256, %s275
        $region32: #{tpu_custom_call.1} parent=27 // pred_fallthru
          _
        // Predicated region
        $region33: #{tpu_custom_call.1} parent=27 // pred_check
          %p284 = pneg %p165
        $region34: #{tpu_custom_call.1} parent=27 // pred_check_branch
          %286 = sbr.rel (%p284) target = $region36
        $region35: #{tpu_custom_call.1} parent=27 // pred_region
          %s287 = smul.u32 4, %s26
          %s288 = ssub.s32 6, %s287
          %p289 = scmp.lt.s32.totalorder %s288, 4
          %s290 = scalar_select %p289, %s288, 4
          %s291 = smul.u32 16, %s290
          %p292 = scmp.lt.s32.totalorder %s287, 5
          %s293 = scalar_select %p292, %s287, 5
          %s294 = scalar_lea.vmem %s4, %s293
          %s295 = smul.u32 4, %s26
          %s296 = ssub.s32 6, %s295
          %p297 = scmp.lt.s32.totalorder %s296, 4
          %s298 = scalar_select %p297, %s296, 4
          %s299 = smul.u32 16, %s298
        $region36: #{tpu_custom_call.1} parent=27 // pred_fallthru
          _
      $region28: #{tpu_custom_call.1} parent=5 // pred_fallthru
        _
      %p300 = scmp.le.s32.totalorder 1, %s18
      %p301 = scmp.lt.s32.totalorder %s18, 3
      %p302 = pnand %p300, %p301
      %p303 = pneg %p302
      // Predicated region
      $region37: #{tpu_custom_call.1} parent=5 // pred_check
        _
      $region38: #{tpu_custom_call.1} parent=5 // pred_check_branch
        %305 = sbr.rel (%p302) target = $region40
      $region39: #{tpu_custom_call.1} parent=5 // pred_region
        %s306 = ssub.s32 %s18, 1
        // Predicated region
        $region41: #{tpu_custom_call.1} parent=39 // pred_check
          %p307 = pneg %p65
        $region42: #{tpu_custom_call.1} parent=39 // pred_check_branch
          %309 = sbr.rel (%p307) target = $region44
        $region43: #{tpu_custom_call.1} parent=39 // pred_region
          %310 = dma.done [#allocation4], 512
        $region44: #{tpu_custom_call.1} parent=39 // pred_fallthru
          _
        %s311 = sand.u32 %s132, 1
        %s312 = scalar_lea.sflag [#allocation7], %s311
        %s313 = sand.u32 %s132, 1
        %s314 = smul.addr %s313, 512
        %s315 = scalar_lea.vmem [#allocation6], %s314
        // Predicated region
        $region45: #{tpu_custom_call.1} parent=39 // pred_check
          %p316 = pneg %p145
        $region46: #{tpu_custom_call.1} parent=39 // pred_check_branch
          %318 = sbr.rel (%p316) target = $region48
        $region47: #{tpu_custom_call.1} parent=39 // pred_region
          %319 = dma.done %s312, 8192
        $region48: #{tpu_custom_call.1} parent=39 // pred_fallthru
          _
        %p320 = pneg %p65
        %p321 = pneg %p62
        %s322 = smul.u32 2, %s30
        %p323 = scmp.lt.s32.totalorder %s322, 1
        %s324 = scalar_select %p323, %s322, 1
        %s325 = scalar_lea.vmem %s1, %s324
        %p326 = pneg %p91
        %p327 = pneg %p88
        %s328 = smul.u32 2, %s30
        %p329 = scmp.lt.s32.totalorder %s328, 1
        %s330 = scalar_select %p329, %s328, 1
        %s331 = scalar_lea.vmem %s2, %s330
        %p332 = pneg %p117
        %p333 = pneg %p114
        %s334 = sand.u32 %s132, 1
        %s335 = scalar_lea.sflag [#allocation7], %s334
        %s336 = sand.u32 %s132, 1
        %s337 = smul.addr %s336, 512
        %s338 = scalar_lea.vmem [#allocation6], %s337
        %p339 = pneg %p145
        %p340 = pneg %p142
        %s341 = smul.u32 4, %s29
        %s342 = ssub.s32 6, %s341
        %p343 = scmp.lt.s32.totalorder %s342, 4
        %s344 = scalar_select %p343, %s342, 4
        %s345 = smul.u32 16, %s344
        %p346 = scmp.lt.s32.totalorder %s341, 5
        %s347 = scalar_select %p346, %s341, 5
        %s348 = scalar_lea.vmem %s4, %s347
        %p349 = pneg %p171
        %p350 = pneg %p168
        %p351 = pneg %p199
        %p352 = pneg %p196
        %s353 = sand.u32 %s186, 1
        %s354 = scalar_lea.sflag [#allocation5], %s353
        %s355 = sand.u32 %s186, 1
        %s356 = smul.addr %s355, 32
        %s357 = scalar_lea.vmem [#allocation8], %s356
        %s358 = smul.u32 2, %s28
        %s359 = smul.u32 2, %s30
        %s360 = smul.u32 2, %s30
        %p361 = scmp.lt.s32.totalorder %s360, 1
        %s362 = scalar_select %p361, %s360, 1
        %s363 = scalar_lea.vmem %s1, %s362
        %s364 = smul.u32 2, %s30
        %s365 = smul.u32 2, %s30
        %p366 = scmp.lt.s32.totalorder %s365, 1
        %s367 = scalar_select %p366, %s365, 1
        %s368 = scalar_lea.vmem %s2, %s367
        %s369 = smul.u32 2, %s30
        %s370 = smul.u32 32, %s30
        %s371 = smul.u32 4, %s29
        %s372 = ssub.s32 6, %s371
        %p373 = scmp.lt.s32.totalorder %s372, 4
        %s374 = scalar_select %p373, %s372, 4
        %s375 = smul.u32 2048, %s374
        %s376 = smul.u32 4, %s29
        %s377 = ssub.s32 6, %s376
        %p378 = scmp.lt.s32.totalorder %s377, 4
        %s379 = scalar_select %p378, %s377, 4
        %s380 = smul.u32 16, %s379
        %p381 = scmp.lt.s32.totalorder %s376, 5
        %s382 = scalar_select %p381, %s376, 5
        %s383 = scalar_lea.vmem %s4, %s382
        %s384 = smul.u32 4, %s29
        %s385 = ssub.s32 6, %s384
        %p386 = scmp.lt.s32.totalorder %s385, 4
        %s387 = scalar_select %p386, %s385, 4
        %s388 = smul.u32 16, %s387
        %s389 = smul.u32 2, %s28
        %s390 = smul.u32 4, %s29
        %s391 = ssub.s32 6, %s390
        %p392 = scmp.lt.s32.totalorder %s391, 4
        %s393 = scalar_select %p392, %s391, 4
        %s394 = smul.u32 128, %s393
        %p395 = scmp.eq.s32.totalorder %s29, 0
        // Predicated region
        $region49: #{tpu_custom_call.1} parent=39 // pred_check
          %p396 = pneg %p395
        $region50: #{tpu_custom_call.1} parent=39 // pred_check_branch
          %398 = sbr.rel (%p396) target = $region52
        $region51: #{tpu_custom_call.1} parent=39 // pred_region
          %v399 = vld [vmem:[#allocation3] sm:$0xff]
          %v400 = vld [vmem:[#allocation3 + $0x8] sm:$0xff]
          %v401 = vld [vmem:[#allocation3 + $0x10] sm:$0xff]
          %v402 = vld [vmem:[#allocation3 + $0x18] sm:$0xff]
          %v403 = vadd.f32 %v399, %v400
          %404 = vadd.xlane.f32.xlu0 %v403
          %v405 = vpop.xlane.xlu0 %404
          %v406 = vadd.f32 %v401, %v402
          %407 = vadd.xlane.f32.xlu0 %v406
          %v408 = vpop.xlane.xlu0 %407
          %v409 = vrcp.pop 256.0
          %v410 = vmul.f32 %v405, %v409
          %v411 = vmul.f32 %v408, %v409
          %v412 = vsub.f32 %v399, %v410
          %v413 = vsub.f32 %v400, %v410
          %v414 = vsub.f32 %v401, %v411
          %v415 = vsub.f32 %v402, %v411
          %v416 = vmul.f32 %v412, %v412
          %v417 = vmul.f32 %v413, %v413
          %v418 = vmul.f32 %v414, %v414
          %v419 = vmul.f32 %v415, %v415
          %v420 = vadd.f32 %v416, %v417
          %421 = vadd.xlane.f32.xlu0 %v420
          %v422 = vpop.xlane.xlu0 %421
          %v423 = vadd.f32 %v418, %v419
          %424 = vadd.xlane.f32.xlu0 %v423
          %v425 = vpop.xlane.xlu0 %424
          %v426 = vmul.f32 %v422, %v409
          %v427 = vmul.f32 %v425, %v409
          %v428 = vadd.f32 %v426, 1e-05
          %v429 = vadd.f32 %v427, 1e-05
          %v430 = vrsqrt.pop %v428
          %v431 = vrsqrt.pop %v429
          %v432 = vmul.f32 %v412, %v430
          %v433 = vmul.f32 %v413, %v430
          %v434 = vmul.f32 %v414, %v431
          %v435 = vmul.f32 %v415, %v431
          %v436 = vld [vmem:[%s363] sm:$0x3]
          %v438 = vlaneseq
          %v439 = vshrl.u32 %v438, 7
          %v440 = vsub.s32 0, %v439
          %v441 = vrot.slane %v436, %v440
          %v442 = vlaneseq
          %v443 = vshrl.u32 %v442, 7
          %v444 = vsub.s32 1, %v443
          %v445 = vrot.slane %v436, %v444
          %v448 = vmul.f32 %v432, %v441
          %v449 = vmul.f32 %v433, %v445
          %v450 = vmul.f32 %v434, %v441
          %v451 = vmul.f32 %v435, %v445
          %v452 = vld [vmem:[%s368] sm:$0x3]
          %v454 = vlaneseq
          %v455 = vshrl.u32 %v454, 7
          %v456 = vsub.s32 0, %v455
          %v457 = vrot.slane %v452, %v456
          %v458 = vlaneseq
          %v459 = vshrl.u32 %v458, 7
          %v460 = vsub.s32 1, %v459
          %v461 = vrot.slane %v452, %v460
          %v464 = vadd.f32 %v448, %v457
          %v465 = vadd.f32 %v449, %v461
          %v466 = vadd.f32 %v450, %v457
          %v467 = vadd.f32 %v451, %v461
          %v468 = vpack.c.bf16 %v466, %v464
          %v469 = vpack.c.bf16 %v467, %v465
          %470 = vst [vmem:[#allocation2] sm:$0xff] %v468
          %471 = vst [vmem:[#allocation2 + $0x8] sm:$0xff] %v469
        $region52: #{tpu_custom_call.1} parent=39 // pred_fallthru
          _
        %v472 = vld [vmem:[#allocation2] sm:$0xff]
        %v473 = vld [vmem:[#allocation2 + $0x8] sm:$0xff]
        %v474 = vld [vmem:[%s315] sm:$0xff]
        %v475 = vld [vmem:[%s315 + $0x8] sm:$0xff]
        %v476 = vld [vmem:[%s315 + $0x10] sm:$0xff]
        %v477 = vld [vmem:[%s315 + $0x18] sm:$0xff]
        %v478 = vld [vmem:[%s315 + $0x20] sm:$0xff]
        %v479 = vld [vmem:[%s315 + $0x28] sm:$0xff]
        %v480 = vld [vmem:[%s315 + $0x30] sm:$0xff]
        %v481 = vld [vmem:[%s315 + $0x38] sm:$0xff]
        %v482 = vld [vmem:[%s315 + $0x40] sm:$0xff]
        %v483 = vld [vmem:[%s315 + $0x48] sm:$0xff]
        %v484 = vld [vmem:[%s315 + $0x50] sm:$0xff]
        %v485 = vld [vmem:[%s315 + $0x58] sm:$0xff]
        %v486 = vld [vmem:[%s315 + $0x60] sm:$0xff]
        %v487 = vld [vmem:[%s315 + $0x68] sm:$0xff]
        %v488 = vld [vmem:[%s315 + $0x70] sm:$0xff]
        %v489 = vld [vmem:[%s315 + $0x78] sm:$0xff]
        %v490 = vld [vmem:[%s315 + $0x80] sm:$0xff]
        %v491 = vld [vmem:[%s315 + $0x88] sm:$0xff]
        %v492 = vld [vmem:[%s315 + $0x90] sm:$0xff]
        %v493 = vld [vmem:[%s315 + $0x98] sm:$0xff]
        %v494 = vld [vmem:[%s315 + $0xa0] sm:$0xff]
        %v495 = vld [vmem:[%s315 + $0xa8] sm:$0xff]
        %v496 = vld [vmem:[%s315 + $0xb0] sm:$0xff]
        %v497 = vld [vmem:[%s315 + $0xb8] sm:$0xff]
        %v498 = vld [vmem:[%s315 + $0xc0] sm:$0xff]
        %v499 = vld [vmem:[%s315 + $0xc8] sm:$0xff]
        %v500 = vld [vmem:[%s315 + $0xd0] sm:$0xff]
        %v501 = vld [vmem:[%s315 + $0xd8] sm:$0xff]
        %v502 = vld [vmem:[%s315 + $0xe0] sm:$0xff]
        %v503 = vld [vmem:[%s315 + $0xe8] sm:$0xff]
        %v504 = vld [vmem:[%s315 + $0xf0] sm:$0xff]
        %v505 = vld [vmem:[%s315 + $0xf8] sm:$0xff]
        %v506 = vld [vmem:[%s315 + $0x100] sm:$0xff]
        %v507 = vld [vmem:[%s315 + $0x108] sm:$0xff]
        %v508 = vld [vmem:[%s315 + $0x110] sm:$0xff]
        %v509 = vld [vmem:[%s315 + $0x118] sm:$0xff]
        %v510 = vld [vmem:[%s315 + $0x120] sm:$0xff]
        %v511 = vld [vmem:[%s315 + $0x128] sm:$0xff]
        %v512 = vld [vmem:[%s315 + $0x130] sm:$0xff]
        %v513 = vld [vmem:[%s315 + $0x138] sm:$0xff]
        %v514 = vld [vmem:[%s315 + $0x140] sm:$0xff]
        %v515 = vld [vmem:[%s315 + $0x148] sm:$0xff]
        %v516 = vld [vmem:[%s315 + $0x150] sm:$0xff]
        %v517 = vld [vmem:[%s315 + $0x158] sm:$0xff]
        %v518 = vld [vmem:[%s315 + $0x160] sm:$0xff]
        %v519 = vld [vmem:[%s315 + $0x168] sm:$0xff]
        %v520 = vld [vmem:[%s315 + $0x170] sm:$0xff]
        %v521 = vld [vmem:[%s315 + $0x178] sm:$0xff]
        %v522 = vld [vmem:[%s315 + $0x180] sm:$0xff]
        %v523 = vld [vmem:[%s315 + $0x188] sm:$0xff]
        %v524 = vld [vmem:[%s315 + $0x190] sm:$0xff]
        %v525 = vld [vmem:[%s315 + $0x198] sm:$0xff]
        %v526 = vld [vmem:[%s315 + $0x1a0] sm:$0xff]
        %v527 = vld [vmem:[%s315 + $0x1a8] sm:$0xff]
        %v528 = vld [vmem:[%s315 + $0x1b0] sm:$0xff]
        %v529 = vld [vmem:[%s315 + $0x1b8] sm:$0xff]
        %v530 = vld [vmem:[%s315 + $0x1c0] sm:$0xff]
        %v531 = vld [vmem:[%s315 + $0x1c8] sm:$0xff]
        %v532 = vld [vmem:[%s315 + $0x1d0] sm:$0xff]
        %v533 = vld [vmem:[%s315 + $0x1d8] sm:$0xff]
        %v534 = vld [vmem:[%s315 + $0x1e0] sm:$0xff]
        %v535 = vld [vmem:[%s315 + $0x1e8] sm:$0xff]
        %v536 = vld [vmem:[%s315 + $0x1f0] sm:$0xff]
        %v537 = vld [vmem:[%s315 + $0x1f8] sm:$0xff]
        %v538 = vld [vmem:[%s383] sm:$0xf]
        %v540 = vlaneseq
        %v541 = vshrl.u32 %v540, 7
        %v542 = vsub.s32 0, %v541
        %v543 = vrot.slane %v538, %v542
        %v544 = vlaneseq
        %v545 = vshrl.u32 %v544, 7
        %v546 = vsub.s32 1, %v545
        %v547 = vrot.slane %v538, %v546
        %v548 = vlaneseq
        %v549 = vshrl.u32 %v548, 7
        %v550 = vsub.s32 2, %v549
        %v551 = vrot.slane %v538, %v550
        %v552 = vlaneseq
        %v553 = vshrl.u32 %v552, 7
        %v554 = vsub.s32 3, %v553
        %v555 = vrot.slane %v538, %v554
        %v624 = vunpack.c.l.b16 %v474
        %v625 = vunpack.c.h.b16 %v474
        %v626 = vunpack.c.l.b16 %v475
        %v627 = vunpack.c.h.b16 %v475
        %v628 = vunpack.c.l.b16 %v476
        %v629 = vunpack.c.h.b16 %v476
        %v630 = vunpack.c.l.b16 %v477
        %v631 = vunpack.c.h.b16 %v477
        %v632 = vunpack.c.l.b16 %v478
        %v633 = vunpack.c.h.b16 %v478
        %v634 = vunpack.c.l.b16 %v479
        %v635 = vunpack.c.h.b16 %v479
        %v636 = vunpack.c.l.b16 %v480
        %v637 = vunpack.c.h.b16 %v480
        %v638 = vunpack.c.l.b16 %v481
        %v639 = vunpack.c.h.b16 %v481
        %v640 = vunpack.c.l.b16 %v482
        %v641 = vunpack.c.h.b16 %v482
        %v642 = vunpack.c.l.b16 %v483
        %v643 = vunpack.c.h.b16 %v483
        %v644 = vunpack.c.l.b16 %v484
        %v645 = vunpack.c.h.b16 %v484
        %v646 = vunpack.c.l.b16 %v485
        %v647 = vunpack.c.h.b16 %v485
        %v648 = vunpack.c.l.b16 %v486
        %v649 = vunpack.c.h.b16 %v486
        %v650 = vunpack.c.l.b16 %v487
        %v651 = vunpack.c.h.b16 %v487
        %v652 = vunpack.c.l.b16 %v488
        %v653 = vunpack.c.h.b16 %v488
        %v654 = vunpack.c.l.b16 %v489
        %v655 = vunpack.c.h.b16 %v489
        %v656 = vunpack.c.l.b16 %v490
        %v657 = vunpack.c.h.b16 %v490
        %v658 = vunpack.c.l.b16 %v491
        %v659 = vunpack.c.h.b16 %v491
        %v660 = vunpack.c.l.b16 %v492
        %v661 = vunpack.c.h.b16 %v492
        %v662 = vunpack.c.l.b16 %v493
        %v663 = vunpack.c.h.b16 %v493
        %v664 = vunpack.c.l.b16 %v494
        %v665 = vunpack.c.h.b16 %v494
        %v666 = vunpack.c.l.b16 %v495
        %v667 = vunpack.c.h.b16 %v495
        %v668 = vunpack.c.l.b16 %v496
        %v669 = vunpack.c.h.b16 %v496
        %v670 = vunpack.c.l.b16 %v497
        %v671 = vunpack.c.h.b16 %v497
        %v672 = vunpack.c.l.b16 %v498
        %v673 = vunpack.c.h.b16 %v498
        %v674 = vunpack.c.l.b16 %v499
        %v675 = vunpack.c.h.b16 %v499
        %v676 = vunpack.c.l.b16 %v500
        %v677 = vunpack.c.h.b16 %v500
        %v678 = vunpack.c.l.b16 %v501
        %v679 = vunpack.c.h.b16 %v501
        %v680 = vunpack.c.l.b16 %v502
        %v681 = vunpack.c.h.b16 %v502
        %v682 = vunpack.c.l.b16 %v503
        %v683 = vunpack.c.h.b16 %v503
        %v684 = vunpack.c.l.b16 %v504
        %v685 = vunpack.c.h.b16 %v504
        %v686 = vunpack.c.l.b16 %v505
        %v687 = vunpack.c.h.b16 %v505
        %v688 = vunpack.c.l.b16 %v506
        %v689 = vunpack.c.h.b16 %v506
        %v690 = vunpack.c.l.b16 %v507
        %v691 = vunpack.c.h.b16 %v507
        %v692 = vunpack.c.l.b16 %v508
        %v693 = vunpack.c.h.b16 %v508
        %v694 = vunpack.c.l.b16 %v509
        %v695 = vunpack.c.h.b16 %v509
        %v696 = vunpack.c.l.b16 %v510
        %v697 = vunpack.c.h.b16 %v510
        %v698 = vunpack.c.l.b16 %v511
        %v699 = vunpack.c.h.b16 %v511
        %v700 = vunpack.c.l.b16 %v512
        %v701 = vunpack.c.h.b16 %v512
        %v702 = vunpack.c.l.b16 %v513
        %v703 = vunpack.c.h.b16 %v513
        %v704 = vunpack.c.l.b16 %v514
        %v705 = vunpack.c.h.b16 %v514
        %v706 = vunpack.c.l.b16 %v515
        %v707 = vunpack.c.h.b16 %v515
        %v708 = vunpack.c.l.b16 %v516
        %v709 = vunpack.c.h.b16 %v516
        %v710 = vunpack.c.l.b16 %v517
        %v711 = vunpack.c.h.b16 %v517
        %v712 = vunpack.c.l.b16 %v518
        %v713 = vunpack.c.h.b16 %v518
        %v714 = vunpack.c.l.b16 %v519
        %v715 = vunpack.c.h.b16 %v519
        %v716 = vunpack.c.l.b16 %v520
        %v717 = vunpack.c.h.b16 %v520
        %v718 = vunpack.c.l.b16 %v521
        %v719 = vunpack.c.h.b16 %v521
        %v720 = vunpack.c.l.b16 %v522
        %v721 = vunpack.c.h.b16 %v522
        %v722 = vunpack.c.l.b16 %v523
        %v723 = vunpack.c.h.b16 %v523
        %v724 = vunpack.c.l.b16 %v524
        %v725 = vunpack.c.h.b16 %v524
        %v726 = vunpack.c.l.b16 %v525
        %v727 = vunpack.c.h.b16 %v525
        %v728 = vunpack.c.l.b16 %v526
        %v729 = vunpack.c.h.b16 %v526
        %v730 = vunpack.c.l.b16 %v527
        %v731 = vunpack.c.h.b16 %v527
        %v732 = vunpack.c.l.b16 %v528
        %v733 = vunpack.c.h.b16 %v528
        %v734 = vunpack.c.l.b16 %v529
        %v735 = vunpack.c.h.b16 %v529
        %v736 = vunpack.c.l.b16 %v530
        %v737 = vunpack.c.h.b16 %v530
        %v738 = vunpack.c.l.b16 %v531
        %v739 = vunpack.c.h.b16 %v531
        %v740 = vunpack.c.l.b16 %v532
        %v741 = vunpack.c.h.b16 %v532
        %v742 = vunpack.c.l.b16 %v533
        %v743 = vunpack.c.h.b16 %v533
        %v744 = vunpack.c.l.b16 %v534
        %v745 = vunpack.c.h.b16 %v534
        %v746 = vunpack.c.l.b16 %v535
        %v747 = vunpack.c.h.b16 %v535
        %v748 = vunpack.c.l.b16 %v536
        %v749 = vunpack.c.h.b16 %v536
        %v750 = vunpack.c.l.b16 %v537
        %v751 = vunpack.c.h.b16 %v537
        %v752 = vpack.c.b16 %v628, %v624
        %v753 = vpack.c.b16 %v629, %v625
        %v754 = vpack.c.b16 %v630, %v626
        %v755 = vpack.c.b16 %v631, %v627
        %v756 = vpack.c.b16 %v636, %v632
        %v757 = vpack.c.b16 %v637, %v633
        %v758 = vpack.c.b16 %v638, %v634
        %v759 = vpack.c.b16 %v639, %v635
        %v760 = vpack.c.b16 %v644, %v640
        %v761 = vpack.c.b16 %v645, %v641
        %v762 = vpack.c.b16 %v646, %v642
        %v763 = vpack.c.b16 %v647, %v643
        %v764 = vpack.c.b16 %v652, %v648
        %v765 = vpack.c.b16 %v653, %v649
        %v766 = vpack.c.b16 %v654, %v650
        %v767 = vpack.c.b16 %v655, %v651
        %v768 = vpack.c.b16 %v660, %v656
        %v769 = vpack.c.b16 %v661, %v657
        %v770 = vpack.c.b16 %v662, %v658
        %v771 = vpack.c.b16 %v663, %v659
        %v772 = vpack.c.b16 %v668, %v664
        %v773 = vpack.c.b16 %v669, %v665
        %v774 = vpack.c.b16 %v670, %v666
        %v775 = vpack.c.b16 %v671, %v667
        %v776 = vpack.c.b16 %v676, %v672
        %v777 = vpack.c.b16 %v677, %v673
        %v778 = vpack.c.b16 %v678, %v674
        %v779 = vpack.c.b16 %v679, %v675
        %v780 = vpack.c.b16 %v684, %v680
        %v781 = vpack.c.b16 %v685, %v681
        %v782 = vpack.c.b16 %v686, %v682
        %v783 = vpack.c.b16 %v687, %v683
        %v784 = vpack.c.b16 %v692, %v688
        %v785 = vpack.c.b16 %v693, %v689
        %v786 = vpack.c.b16 %v694, %v690
        %v787 = vpack.c.b16 %v695, %v691
        %v788 = vpack.c.b16 %v700, %v696
        %v789 = vpack.c.b16 %v701, %v697
        %v790 = vpack.c.b16 %v702, %v698
        %v791 = vpack.c.b16 %v703, %v699
        %v792 = vpack.c.b16 %v708, %v704
        %v793 = vpack.c.b16 %v709, %v705
        %v794 = vpack.c.b16 %v710, %v706
        %v795 = vpack.c.b16 %v711, %v707
        %v796 = vpack.c.b16 %v716, %v712
        %v797 = vpack.c.b16 %v717, %v713
        %v798 = vpack.c.b16 %v718, %v714
        %v799 = vpack.c.b16 %v719, %v715
        %v800 = vpack.c.b16 %v724, %v720
        %v801 = vpack.c.b16 %v725, %v721
        %v802 = vpack.c.b16 %v726, %v722
        %v803 = vpack.c.b16 %v727, %v723
        %v804 = vpack.c.b16 %v732, %v728
        %v805 = vpack.c.b16 %v733, %v729
        %v806 = vpack.c.b16 %v734, %v730
        %v807 = vpack.c.b16 %v735, %v731
        %v808 = vpack.c.b16 %v740, %v736
        %v809 = vpack.c.b16 %v741, %v737
        %v810 = vpack.c.b16 %v742, %v738
        %v811 = vpack.c.b16 %v743, %v739
        %v812 = vpack.c.b16 %v748, %v744
        %v813 = vpack.c.b16 %v749, %v745
        %v814 = vpack.c.b16 %v750, %v746
        %v815 = vpack.c.b16 %v751, %v747
        %880 = vmatprep.subr.bf16.mxu0 %v753
        %881 = vmatpush1.bf16.msra.mxu0 %v752
        %882 = vmatprep.subr.bf16.mxu0 %v757
        %883 = vmatpush1.bf16.msra.mxu0 %v756
        %884 = vmatprep.subr.bf16.mxu0 %v761
        %885 = vmatpush1.bf16.msra.mxu0 %v760
        %886 = vmatprep.subr.bf16.mxu0 %v765
        %887 = vmatpush1.bf16.msra.mxu0 %v764
        %888 = vmatprep.subr.bf16.mxu0 %v769
        %889 = vmatpush1.bf16.msra.mxu0 %v768
        %890 = vmatprep.subr.bf16.mxu0 %v773
        %891 = vmatpush1.bf16.msra.mxu0 %v772
        %892 = vmatprep.subr.bf16.mxu0 %v777
        %893 = vmatpush1.bf16.msra.mxu0 %v776
        %894 = vmatprep.subr.bf16.mxu0 %v781
        %895 = vmatpush1.bf16.msra.mxu0 %v780
        %896 = vmatprep.subr.bf16.mxu0 %v785
        %897 = vmatpush1.bf16.msra.mxu0 %v784
        %898 = vmatprep.subr.bf16.mxu0 %v789
        %899 = vmatpush1.bf16.msra.mxu0 %v788
        %900 = vmatprep.subr.bf16.mxu0 %v793
        %901 = vmatpush1.bf16.msra.mxu0 %v792
        %902 = vmatprep.subr.bf16.mxu0 %v797
        %903 = vmatpush1.bf16.msra.mxu0 %v796
        %904 = vmatprep.subr.bf16.mxu0 %v801
        %905 = vmatpush1.bf16.msra.mxu0 %v800
        %906 = vmatprep.subr.bf16.mxu0 %v805
        %907 = vmatpush1.bf16.msra.mxu0 %v804
        %908 = vmatprep.subr.bf16.mxu0 %v809
        %909 = vmatpush1.bf16.msra.mxu0 %v808
        %910 = vmatprep.subr.bf16.mxu0 %v813
        %911 = vmatpush1.bf16.msra.mxu0 %v812
        %912 = vmatprep.mubr.bf16.mxu0 %v473
        %913 = vmatmul.mubr.bf16.gmra.mrb[0].mxu0 %v472
        %v914 = vpop.f32.mrb[0].mxu0
        %v915 = vadd.f32 %v543, %v914
        %v916 = vpop.f32.mrb[0].mxu0
        %v917 = vadd.f32 %v547, %v916
        %v918 = vpop.f32.mrb[0].mxu0
        %v919 = vadd.f32 %v543, %v918
        %v920 = vpop.f32.mrb[0].mxu0
        %v921 = vadd.f32 %v547, %v920
        %922 = vdwg.mxu0
        %923 = vmatprep.subr.bf16.mxu0 %v755
        %924 = vmatpush1.bf16.msra.mxu0 %v754
        %925 = vmatprep.subr.bf16.mxu0 %v759
        %926 = vmatpush1.bf16.msra.mxu0 %v758
        %927 = vmatprep.subr.bf16.mxu0 %v763
        %928 = vmatpush1.bf16.msra.mxu0 %v762
        %929 = vmatprep.subr.bf16.mxu0 %v767
        %930 = vmatpush1.bf16.msra.mxu0 %v766
        %931 = vmatprep.subr.bf16.mxu0 %v771
        %932 = vmatpush1.bf16.msra.mxu0 %v770
        %933 = vmatprep.subr.bf16.mxu0 %v775
        %934 = vmatpush1.bf16.msra.mxu0 %v774
        %935 = vmatprep.subr.bf16.mxu0 %v779
        %936 = vmatpush1.bf16.msra.mxu0 %v778
        %937 = vmatprep.subr.bf16.mxu0 %v783
        %938 = vmatpush1.bf16.msra.mxu0 %v782
        %939 = vmatprep.subr.bf16.mxu0 %v787
        %940 = vmatpush1.bf16.msra.mxu0 %v786
        %941 = vmatprep.subr.bf16.mxu0 %v791
        %942 = vmatpush1.bf16.msra.mxu0 %v790
        %943 = vmatprep.subr.bf16.mxu0 %v795
        %944 = vmatpush1.bf16.msra.mxu0 %v794
        %945 = vmatprep.subr.bf16.mxu0 %v799
        %946 = vmatpush1.bf16.msra.mxu0 %v798
        %947 = vmatprep.subr.bf16.mxu0 %v803
        %948 = vmatpush1.bf16.msra.mxu0 %v802
        %949 = vmatprep.subr.bf16.mxu0 %v807
        %950 = vmatpush1.bf16.msra.mxu0 %v806
        %951 = vmatprep.subr.bf16.mxu0 %v811
        %952 = vmatpush1.bf16.msra.mxu0 %v810
        %953 = vmatprep.subr.bf16.mxu0 %v815
        %954 = vmatpush1.bf16.msra.mxu0 %v814
        %955 = vmatprep.mubr.bf16.mxu0 %v473
        %956 = vmatmul.mubr.bf16.gmra.mrb[0].mxu0 %v472
        %v957 = vpop.f32.mrb[0].mxu0
        %v958 = vadd.f32 %v551, %v957
        %v959 = vpop.f32.mrb[0].mxu0
        %v960 = vadd.f32 %v555, %v959
        %v961 = vpop.f32.mrb[0].mxu0
        %v962 = vadd.f32 %v551, %v961
        %v963 = vpop.f32.mrb[0].mxu0
        %v964 = vadd.f32 %v555, %v963
        %965 = vdwg.mxu0
        %v966 = vpack.c.bf16 %v919, %v915
        %v967 = vpack.c.bf16 %v921, %v917
        %v968 = vpack.c.bf16 %v962, %v958
        %v969 = vpack.c.bf16 %v964, %v960
        %v974 = vunpack.c.l.b16 %v966
        %v975 = vunpack.c.l.b16 %v967
        %v976 = vunpack.c.l.b16 %v968
        %v977 = vunpack.c.l.b16 %v969
        %v978 = vunpack.c.h.b16 %v966
        %v979 = vunpack.c.h.b16 %v967
        %v980 = vunpack.c.h.b16 %v968
        %v981 = vunpack.c.h.b16 %v969
        %v982 = vpack.c.b16 %v975, %v974
        %v983 = vpack.c.b16 %v977, %v976
        %v984 = vpack.c.b16 %v979, %v978
        %v985 = vpack.c.b16 %v981, %v980
        %990 = vst [vmem:[%s357] sm:$0xff] %v982
        %991 = vst [vmem:[%s357 + $0x8] sm:$0xff] %v983
        %992 = vst [vmem:[%s357 + $0x10] sm:$0xff] %v984
        %993 = vst [vmem:[%s357 + $0x18] sm:$0xff] %v985
        %s994 = sand.u32 %s186, 1
        %s995 = scalar_lea.sflag [#allocation5], %s994
        %s996 = sand.u32 %s186, 1
        %s997 = smul.addr %s996, 32
        %s998 = scalar_lea.vmem [#allocation8], %s997
        // Predicated region
        $region53: #{tpu_custom_call.1} parent=39 // pred_check
          %p999 = pneg %p196
        $region54: #{tpu_custom_call.1} parent=39 // pred_check_branch
          %1001 = sbr.rel (%p999) target = $region56
        $region55: #{tpu_custom_call.1} parent=39 // pred_region
          %s1002 = smul.u32 2, %s28
          %s1003 = smul.u32 4, %s29
          %s1004 = ssub.s32 6, %s1003
          %p1005 = scmp.lt.s32.totalorder %s1004, 4
          %s1006 = scalar_select %p1005, %s1004, 4
          %s1007 = smul.u32 128, %s1006
          %s1009 = ssub.s32 512, %s1007
          %1010 = vsyncadd %s995, %s1009
          %p1011 = scmp.ne.s32.totalorder 0, %s1007
          %s1012 = smul.addr %s1002, 6
          %s1013 = sadd.s32 %s1003, %s1012
          %s1014 = smul.addr %s1013, 64
          %s1015 = scalar_lea.hbm %s5, %s1014
          %s1016 = smul.u32 %s1006, 4
          %s1017 = smul.u32 %s1016, 2
          %s1018 = sshll.u32 %s998, 4
          %s1019 = int_to_ptr.vmem [resolvable:$true] %s1018
          %s1020 = sshll.u32 %s1017, 4
          %1024 = dma.vmem_to_hbm [thread:$0]  (%p1011), %s1019, %s1020, %s1015, %s995, 256, 384, %s1016
        $region56: #{tpu_custom_call.1} parent=39 // pred_fallthru
          _
      $region40: #{tpu_custom_call.1} parent=5 // pred_fallthru
        _
      %p1025 = scmp.le.s32.totalorder 2, %s18
      // Predicated region
      $region57: #{tpu_custom_call.1} parent=5 // pred_check
        %p1026 = pneg %p1025
      $region58: #{tpu_custom_call.1} parent=5 // pred_check_branch
        %1028 = sbr.rel (%p1026) target = $region60
      $region59: #{tpu_custom_call.1} parent=5 // pred_region
        %s1029 = ssub.s32 %s18, 2
        // Predicated region
        $region61: #{tpu_custom_call.1} parent=59 // pred_check
          %p1030 = pneg %p202
        $region62: #{tpu_custom_call.1} parent=59 // pred_check_branch
          %1032 = sbr.rel (%p1030) target = $region64
        $region63: #{tpu_custom_call.1} parent=59 // pred_region
          %s1033 = sand.u32 %s187, 1
          %s1034 = scalar_lea.sflag [#allocation5], %s1033
          %s1035 = sand.u32 %s187, 1
          %s1036 = smul.addr %s1035, 32
          %s1037 = scalar_lea.vmem [#allocation8], %s1036
          %1038 = dma.done %s1034, 512
        $region64: #{tpu_custom_call.1} parent=59 // pred_fallthru
          _
      $region60: #{tpu_custom_call.1} parent=5 // pred_fallthru
        _
    $region6: #{tpu_custom_call.1} parent=1 // loop_footer
      %s22 = sadd.s32 1, %s18
    $region7: #{tpu_custom_call.1} parent=1 // loop_footer_branch
      %17 = sbr.rel target = $region3
    $region8: #{tpu_custom_call.1} parent=1 // loop_exit
      _
    %1039 = vsyncpa [#allocation4], 1
    %s1040 = scalar_lea.sflag [#allocation4], 1
    %1041 = vsyncpa %s1040, 1
    %1042 = vsyncpa [#allocation7], 1
    %s1043 = scalar_lea.sflag [#allocation7], 1
    %1044 = vsyncpa %s1043, 1
    %1045 = vsyncpa [#allocation5], 1
    %s1046 = scalar_lea.sflag [#allocation5], 1
    %1047 = vsyncpa %s1046, 1

</llo_original>
